<compile_context>
chip_gen: v5e
topology: v5e:2x2
jax: 0.10.0
libtpu: 0.0.40
codegen_flags: <defaults>
</compile_context>

<pallas_src>
import functools

import jax
import jax.numpy as jnp
from jax.experimental import pallas as pl
from jax.experimental.pallas import tpu as pltpu


def _scale_kernel(scale_ref, x_ref, o_ref, *, compute_dtype):
    # scale_ref lives in SMEM (scalar prefetch): one scalar read per grid step,
    # broadcast hoisted by the compiler.  One vmul per vreg — VALU never binds,
    # the kernel is purely HBM-bandwidth bound.
    s = scale_ref[0].astype(compute_dtype)
    o_ref[...] = (x_ref[...].astype(compute_dtype) * s).astype(o_ref.dtype)


# Prefer 512/1024 lanes: already fully lane-dense (unmasked vst) and leaves more
# row blocks than 4096, so mid-size inputs still get >=2 grid steps (needed to
# occupy both v7x TensorCores).
_LANE_CANDIDATES = (512, 1024, 256, 2048, 128, 4096)

# Below ~1 MiB a standalone kernel can't beat XLA fusion (launch + DMA setup
# dominates); just emit the multiply and let XLA fuse it.
_MIN_PALLAS_BYTES = 1 << 20

# (target block bytes, vmem_limit_bytes or None) per TPU generation.
#   v7x : ~3.2 TB/s HBM, 64 MiB VMEM (32 MiB scoped default) -> 6 MiB blocks;
#         in+out double-buffered = 24 MiB, so raise the scoped limit to 48 MiB.
#   v6e : ~1.35 TB/s, 128 MiB VMEM (32 MiB scoped) -> 4 MiB blocks, no flag.
#   v5e : ~0.82 TB/s, 16 MiB scoped default -> 3 MiB blocks (12 MiB in flight).
_GEN_PARAMS = {
    "v7": (6 * 1024 * 1024, 48 << 20),
    "v6": (4 * 1024 * 1024, None),
    "v5": (3 * 1024 * 1024, None),
    "default": (2 * 1024 * 1024, None),
}


def _tpu_generation() -> str:
    try:
        kind = jax.devices()[0].device_kind.lower()
    except Exception:  # non-TPU / exotic backends: conservative defaults
        return "default"
    for tag in ("v7", "v6", "v5"):
        if tag in kind:
            return tag
    return "default"


def _sublane_multiple(dtype) -> int:
    # Packed sublane count of one full vreg tile: 8 for 32-bit, 16 for 16-bit,
    # 32 for 8-bit dtypes (sub-32-bit dtypes pack along sublanes).
    return 8 * max(1, 4 // jnp.dtype(dtype).itemsize)


def _pick_compute_dtype(dtype, gen):
    d = jnp.dtype(dtype)
    native_bf16 = gen in ("v6", "v7")
    if d == jnp.dtype(jnp.bfloat16):
        # v6e/v7x have native bf16 VALU; v5e does not -> upcast to f32 there.
        return jnp.bfloat16 if native_bf16 else jnp.float32
    if native_bf16 and d.itemsize == 1 and jnp.issubdtype(d, jnp.floating):
        # fp8 inputs: no fp8 VALU math; upcast only to bf16 (half the vregs).
        return jnp.bfloat16
    return jnp.float32


def _pick_2d_layout(n: int, row_mult: int):
    """Lane-dense [rows, cols] view of a flat, 128-aligned element count."""
    for c in _LANE_CANDIDATES:
        if n % c == 0 and (n // c) % row_mult == 0:
            return n // c, c
    for c in _LANE_CANDIDATES:  # fall back: any 128-multiple column count
        if n % c == 0:
            return n // c, c
    raise AssertionError("bulk element count must be a multiple of 128")


def scale_forward(x: jax.Array, scale, *, force_pallas: bool = False,
                  donate_input: bool = False) -> jax.Array:
    """Compute x * scale (same shape/dtype as x) with a Pallas TPU kernel."""
    orig_shape = x.shape
    orig_dtype = x.dtype

    if not jnp.issubdtype(orig_dtype, jnp.floating):
        # TODO(synk): torch promotes int * float-scalar to a float tensor; keep
        # that promotion in plain JAX rather than truncating inside the kernel.
        return x * scale

    n = x.size
    itemsize = jnp.dtype(orig_dtype).itemsize
    if n == 0 or (not force_pallas and n * itemsize < _MIN_PALLAS_BYTES):
        # Tiny tensors: XLA-fused multiply beats a standalone kernel.
        return x * jnp.asarray(scale, orig_dtype)

    gen = _tpu_generation()
    block_bytes, vmem_limit = _GEN_PARAMS.get(gen, _GEN_PARAMS["default"])
    row_mult = _sublane_multiple(orig_dtype)
    compute_dtype = _pick_compute_dtype(orig_dtype, gen)

    flat = jnp.ravel(x)
    tail = n % 128
    bulk = n - tail
    if bulk == 0:
        # Fewer than 128 elements total: not worth a kernel at all.
        return x * jnp.asarray(scale, orig_dtype)

    rows, cols = _pick_2d_layout(bulk, row_mult)
    bulk_flat = flat[:bulk] if tail else flat
    x2d = bulk_flat.reshape(rows, cols)

    # Row block sized to the generation target: per-grid-step overhead
    # (~0.35 us) must be amortized against each block's read+write DMA time.
    tr = max(row_mult, (block_bytes // (cols * itemsize)) // row_mult * row_mult)
    if rows >= row_mult:
        tr = min(tr, rows)
        if gen == "v7" and rows >= 2 * row_mult:
            # Guarantee >=2 grid steps so ("parallel",) shards the stream over
            # v7x's two TensorCores instead of leaving one idle.
            half = (-(-rows // 2) + row_mult - 1) // row_mult * row_mult
            tr = min(tr, max(row_mult, half))
    else:
        tr = rows  # block == full (small) array dims; exempt from (8,128) rule
    grid = (pl.cdiv(rows, tr),)  # ragged last block handled by masked stores

    scale_arr = jnp.asarray(scale, jnp.float32).reshape((1,))

    compiler_kwargs = dict(dimension_semantics=("parallel",))
    if vmem_limit is not None:
        compiler_kwargs["vmem_limit_bytes"] = vmem_limit

    out2d = pl.pallas_call(
        functools.partial(_scale_kernel, compute_dtype=compute_dtype),
        out_shape=jax.ShapeDtypeStruct((rows, cols), orig_dtype),
        grid_spec=pltpu.PrefetchScalarGridSpec(
            num_scalar_prefetch=1,
            grid=grid,
            # index_maps receive the prefetched scalar ref as a trailing arg.
            in_specs=[pl.BlockSpec((tr, cols), lambda i, s_ref: (i, 0))],
            out_specs=pl.BlockSpec((tr, cols), lambda i, s_ref: (i, 0)),
        ),
        compiler_params=pltpu.CompilerParams(**compiler_kwargs),
        # Advisory cost hint so XLA can schedule neighbors around this op.
        cost_estimate=pl.CostEstimate(
            flops=bulk, transcendentals=0, bytes_accessed=2 * bulk * itemsize),
        # Operand indices count the scalar-prefetch arg: 0 = scale, 1 = x2d.
        # Aliasing writes the result in place (no second full-size HBM alloc);
        # only enable when the caller actually donates x.
        input_output_aliases=({1: 0} if donate_input else {}),
    )(scale_arr, x2d)

    out_flat = out2d.reshape(-1)
    if tail:
        # TODO(synk): the concatenate still costs one extra HBM pass for awkward
        # (n % 128 != 0) sizes — half the cost of the old pad+slice fallback.
        tail_out = flat[bulk:] * jnp.asarray(scale, orig_dtype)
        out_flat = jnp.concatenate([out_flat, tail_out])
    return out_flat.reshape(orig_shape)


if __name__ == "__main__":
    # `Scale(scale)` has no learned parameters; its only constructor constant
    # is `scale`.  Choose it deterministically.
    SCALE = 0.5

    key = jax.random.PRNGKey(0)
    x = jax.random.normal(key, (2, 4, 16, 16), dtype=jnp.float32)  # NCHW

    # Force the Pallas path (the small-input bypass would otherwise hand this
    # 8 KiB tensor straight to XLA fusion).
    y = jax.block_until_ready(scale_forward(x, SCALE, force_pallas=True))
    ref = x * SCALE
    assert y.shape == x.shape and y.dtype == x.dtype
    assert jnp.allclose(y, ref, atol=1e-6, rtol=1e-6)

    # bf16 path (native bf16 multiply on v6e/v7x, f32 compute on v5e).
    xb = x.astype(jnp.bfloat16)
    yb = jax.block_until_ready(scale_forward(xb, SCALE, force_pallas=True))
    assert yb.shape == xb.shape and yb.dtype == jnp.bfloat16
    assert jnp.allclose(yb.astype(jnp.float32),
                        xb.astype(jnp.float32) * SCALE, atol=1e-2, rtol=1e-2)

    # Ragged size (n % 128 != 0): aligned bulk in the kernel, tail in plain JAX.
    xr = jax.random.normal(jax.random.PRNGKey(1), (5, 7, 13), dtype=jnp.float32)
    yr = jax.block_until_ready(scale_forward(xr, SCALE, force_pallas=True))
    assert yr.shape == xr.shape and yr.dtype == xr.dtype
    assert jnp.allclose(yr, xr * SCALE, atol=1e-6, rtol=1e-6)

    print("KERNEL_OK")
</pallas_src>

<mosaic_0001>
module attributes {stable_mosaic.version = 11 : i64} {
  func.func @_scale_kernel(%arg0: i32, %arg1: memref<1xf32, #tpu.memory_space<smem>>, %arg2: memref<8x256xf32, #tpu.memory_space<vmem>>, %arg3: memref<8x256xf32, #tpu.memory_space<vmem>>) attributes {dimension_semantics = [#tpu.dimension_semantics<parallel>], iteration_bounds = array<i64: 1>, scalar_prefetch = 1 : i64, scratch_operands = 0 : i64, tpu.core_type = #tpu.core_type<tc>, window_params = [{transform_indices = @transform_0, window_bounds = array<i64: 8, 256>}, {transform_indices = @transform_1, window_bounds = array<i64: 8, 256>}]} {
    %c0 = arith.constant 0 : index
    %0 = memref.load %arg1[%c0] : memref<1xf32, #tpu.memory_space<smem>>
    %c0_0 = arith.constant 0 : index
    %c0_1 = arith.constant 0 : index
    %1 = vector.load %arg2[%c0_0, %c0_1] : memref<8x256xf32, #tpu.memory_space<vmem>>, vector<8x256xf32>
    %2 = vector.broadcast %0 : f32 to vector<8x256xf32>
    %3 = arith.mulf %1, %2 : vector<8x256xf32>
    %c0_2 = arith.constant 0 : index
    %c0_3 = arith.constant 0 : index
    %4 = vector.load %arg3[%c0_2, %c0_3] : memref<8x256xf32, #tpu.memory_space<vmem>>, vector<8x256xf32>
    tpu.vector_store %arg3[%c0_2, %c0_3], %3 {strides = array<i32>} : memref<8x256xf32, #tpu.memory_space<vmem>>, vector<8x256xf32>,
    return
  }
  func.func @transform_0(%arg0: i32, %arg1: memref<1xf32, #tpu.memory_space<smem>>) -> (i32, i32) {
    %c0_i32 = arith.constant 0 : i32
    %c0_i32_0 = arith.constant 0 : i32
    return %arg0, %c0_i32 : i32, i32
  }
  func.func @transform_1(%arg0: i32, %arg1: memref<1xf32, #tpu.memory_space<smem>>) -> (i32, i32) {
    %c0_i32 = arith.constant 0 : i32
    %c0_i32_0 = arith.constant 0 : i32
    return %arg0, %c0_i32 : i32, i32
  }
}

</mosaic_0001>

<llo_original>
// kernel: tpu_custom_call.1
$region0: #{tpu_custom_call.1}
  #allocation0 [shape = 'u32[]', space=smem, size = 0x4, offset = 0x4, fixed_abs, tag = 'smem constant byte address 0x4 - core index']
  #allocation1 [shape = 'u32[72,128]{1,0:T(1,128)}', space=vmem, size = 0x9000, scoped, tag = 'internal scratch']
  #allocation2 [shape = 's32[1]{0}', space=sflag, size = 0x4, scoped, tag = 'scoped memory for tpu_custom_call.1']
  #allocation3 [shape = 'f32[1]{0:T(128)S(6)}', space=smem, size = 0x200, scoped, tag = 'prefetched SMEM operand 0']
  %s0 = inlined_call_operand.<no memory space> [shape: f32[1], index: 0, kind: input, shape index: {}]
  %s1 = inlined_call_operand.hbm [shape: f32[8,256], index: 1, kind: input, shape index: {}]
  %s2 = inlined_call_operand.hbm [shape: f32[8,256], index: 2, kind: output, shape index: {}]
  %s3 = sld [smem:[#allocation0]]
  $region18: #{tpu_custom_call.1} parent=0
    _
  %s5 = ssub.s32 1, %s3
  %s6 = scalar_select 0, %s5, %s3
  %7 = sst [smem:[#allocation3]] %s0
  $region1: #{tpu_custom_call.1} parent=0
    #allocation4 [shape = 'u8[8192]{0}', space=vmem, size = 0x2000, scoped, tag = 'input window, operand 1, single buffered']
    #allocation5 [shape = 's32[1]{0}', space=sflag, size = 0x4, scoped, tag = 'scoped memory for tpu_custom_call.1']
    #allocation6 [shape = 's32[1]{0}', space=sflag, size = 0x4, scoped, tag = 'scoped memory for tpu_custom_call.1']
    #allocation7 [shape = 'u8[8192]{0}', space=vmem, size = 0x2000, scoped, tag = 'output window, operand 0, single buffered']
    %8 = vsyncpa [#allocation5], 0
    %9 = vsyncpa [#allocation6], 0
    // Predicated region
    $region2: #{tpu_custom_call.1} parent=1 // pred_check
      _
    $region3: #{tpu_custom_call.1} parent=1 // pred_check_branch
      %11 = sbr.rel (0) target = $region5
    $region4: #{tpu_custom_call.1} parent=1 // pred_region
      %13 = vsyncadd [#allocation5], 0
      %s15 = sshll.u32 %s1, 4
      %s16 = int_to_ptr.hbm [resolvable:$true] %s15
      %s17 = sshll.u32 [#allocation4], 4
      %s18 = int_to_ptr.vmem [resolvable:$true] %s17
      %20 = dma.hbm_to_vmem [thread:$0]  %s16, 256, %s18, [#allocation5]
    $region5: #{tpu_custom_call.1} parent=1 // pred_fallthru
      _
    // Predicated region
    $region6: #{tpu_custom_call.1} parent=1 // pred_check
      _
    $region7: #{tpu_custom_call.1} parent=1 // pred_check_branch
      %22 = sbr.rel (0) target = $region9
    $region8: #{tpu_custom_call.1} parent=1 // pred_region
      %24 = dma.done [#allocation5], 256
    $region9: #{tpu_custom_call.1} parent=1 // pred_fallthru
      _
    %s25 = sld [smem:[#allocation3]]
    %v26 = vld [vmem:[#allocation4] sm:$0xff]
    %v27 = vld [vmem:[#allocation4 + $0x8] sm:$0xff]
    %v28 = vstv %s25
    %v29 = vmul.f32 %v26, %v28
    %v30 = vmul.f32 %v27, %v28
    %31 = vst [vmem:[#allocation7] sm:$0xff] %v29
    %32 = vst [vmem:[#allocation7 + $0x8] sm:$0xff] %v30
    // Predicated region
    $region10: #{tpu_custom_call.1} parent=1 // pred_check
      _
    $region11: #{tpu_custom_call.1} parent=1 // pred_check_branch
      %34 = sbr.rel (0) target = $region13
    $region12: #{tpu_custom_call.1} parent=1 // pred_region
      %36 = vsyncadd [#allocation6], 0
      %s38 = sshll.u32 [#allocation7], 4
      %s39 = int_to_ptr.vmem [resolvable:$true] %s38
      %s40 = sshll.u32 %s2, 4
      %s41 = int_to_ptr.hbm [resolvable:$true] %s40
      %43 = dma.vmem_to_hbm [thread:$0]  %s39, 256, %s41, [#allocation6]
    $region13: #{tpu_custom_call.1} parent=1 // pred_fallthru
      _
    // Predicated region
    $region14: #{tpu_custom_call.1} parent=1 // pred_check
      _
    $region15: #{tpu_custom_call.1} parent=1 // pred_check_branch
      %45 = sbr.rel (0) target = $region17
    $region16: #{tpu_custom_call.1} parent=1 // pred_region
      %47 = dma.done [#allocation6], 256
    $region17: #{tpu_custom_call.1} parent=1 // pred_fallthru
      _
    %48 = vsyncpa [#allocation5], 1
    %49 = vsyncpa [#allocation6], 1

</llo_original>
